<compile_context>
chip_gen: v7x
topology: tpu7x:2x2x1
jax: 0.10.0
libtpu: 0.0.40
codegen_flags: <defaults>
</compile_context>

<pallas_src>
import functools

import jax
import jax.numpy as jnp
import numpy as np
from jax.experimental import pallas as pl
from jax.experimental.pallas import tpu as pltpu


def _downsample_b_kernel(x_ref, p_ref, o_ref, *, cin, cout):
    """One batch element: avg-pool via one MXU matmul + zero-channel expand.

    x_ref : [1, Cin,  H*W ]   flattened spatial plane per input channel
    p_ref : [H*W, Ho*Wo]      averaging matrix (1/stride^2 entries)
    o_ref : [1, Cout, Ho*Wo]  pooled channels followed by zero channels
    """
    pooled = jnp.dot(x_ref[0], p_ref[...],
                     preferred_element_type=jnp.float32)      # [Cin, Ho*Wo]
    if cout > cin:  # static: expand_ratio > 1 -> append zero channels
        zeros = jnp.zeros((cout - cin, pooled.shape[1]), jnp.float32)
        full = jnp.concatenate([pooled, zeros], axis=0)       # [Cout, Ho*Wo]
    else:
        full = pooled
    o_ref[0] = full.astype(o_ref.dtype)                       # one full store


def _pool_matrix(hs, ws, ho, wo, stride):
    """P[h*ws + w, i*wo + j] = 1/stride^2 iff (h//stride, w//stride) == (i, j)."""
    col = ((np.arange(hs) // stride)[:, None] * wo
           + (np.arange(ws) // stride)[None, :]).reshape(hs * ws)
    p = (col[:, None] == np.arange(ho * wo)[None, :]).astype(np.float32)
    return jnp.asarray(p * (1.0 / float(stride * stride)))


@functools.partial(jax.jit, static_argnums=(1, 2))
def downsample_b_forward(x_nchw, n_out, stride):
    """Pallas-backed DownsampleB.forward; NCHW in, NCHW out (like PyTorch)."""
    n, cin, h, w = x_nchw.shape
    expand_ratio = n_out // cin
    cout = max(expand_ratio, 1) * cin        # torch.cat([x] + [0*x]*(r-1))
    ho, wo = h // stride, w // stride        # AvgPool2d floor behaviour
    hs, ws = ho * stride, wo * stride

    # Crop + flatten spatial dims: free reshapes of a contiguous NCHW buffer.
    x_flat = x_nchw[:, :, :hs, :ws].reshape(n, cin, hs * ws).astype(jnp.float32)
    p = _pool_matrix(hs, ws, ho, wo, stride)

    kernel = functools.partial(_downsample_b_kernel, cin=cin, cout=cout)
    out = pl.pallas_call(
        kernel,
        out_shape=jax.ShapeDtypeStruct((n, cout, ho * wo), jnp.float32),
        grid=(n,),
        in_specs=[
            pl.BlockSpec((1, cin, hs * ws), lambda i: (i, 0, 0)),
            pl.BlockSpec((hs * ws, ho * wo), lambda i: (0, 0)),  # VMEM-resident
        ],
        out_specs=pl.BlockSpec((1, cout, ho * wo), lambda i: (i, 0, 0)),
        compiler_params=pltpu.CompilerParams(
            dimension_semantics=("parallel",),   # megacore sharding on v7x
        ),
    )(x_flat, p)
    return out.reshape(n, cout, ho, wo)          # free reshape back to NCHW


# ---------------- pure-JAX reference (correctness check) ----------------
def _ref_forward(x_nchw, n_out, stride):
    n, c, h, w = x_nchw.shape
    ho, wo = h // stride, w // stride
    xr = x_nchw[:, :, :ho * stride, :wo * stride]
    pooled = xr.reshape(n, c, ho, stride, wo, stride).mean(axis=(3, 5))
    expand_ratio = n_out // c
    if expand_ratio > 1:
        zeros = jnp.zeros((n, (expand_ratio - 1) * c, ho, wo), pooled.dtype)
        pooled = jnp.concatenate([pooled, zeros], axis=1)
    return pooled


if __name__ == "__main__":
    # DownsampleB(nIn=4, nOut=8, stride=2); input N=2, C=4, H=W=16
    N, nIn, nOut, H, W, stride = 2, 4, 8, 16, 16, 2

    key = jax.random.PRNGKey(0)
    x = jax.random.normal(key, (N, nIn, H, W), dtype=jnp.float32)

    out = jax.block_until_ready(downsample_b_forward(x, nOut, stride))
    ref = jax.block_until_ready(_ref_forward(x, nOut, stride))
    np.testing.assert_allclose(np.asarray(out), np.asarray(ref),
                               rtol=1e-4, atol=1e-4)

    print("KERNEL_OK")
</pallas_src>

<mosaic_0001>
module attributes {stable_mosaic.version = 11 : i64} {
  func.func @_downsample_b_kernel(%arg0: i32, %arg1: memref<1x4x256xf32, #tpu.memory_space<vmem>>, %arg2: memref<256x64xf32, #tpu.memory_space<vmem>>, %arg3: memref<1x8x64xf32, #tpu.memory_space<vmem>>) attributes {dimension_semantics = [#tpu.dimension_semantics<parallel>], iteration_bounds = array<i64: 2>, scalar_prefetch = 0 : i64, scratch_operands = 0 : i64, tpu.core_type = #tpu.core_type<tc>, window_params = [{transform_indices = @transform_0, window_bounds = array<i64: 1, 4, 256>}, {pipeline_mode = #tpu.pipeline_mode<synchronous>, transform_indices = @transform_1, window_bounds = array<i64: 256, 64>}, {transform_indices = @transform_2, window_bounds = array<i64: 1, 8, 64>}]} {
    %c0 = arith.constant 0 : index
    %c0_0 = arith.constant 0 : index
    %c0_1 = arith.constant 0 : index
    %0 = vector.load %arg1[%c0, %c0_0, %c0_1] : memref<1x4x256xf32, #tpu.memory_space<vmem>>, vector<1x4x256xf32>
    %1 = vector.shape_cast %0 : vector<1x4x256xf32> to vector<4x256xf32>
    %c0_2 = arith.constant 0 : index
    %c0_3 = arith.constant 0 : index
    %2 = vector.load %arg2[%c0_2, %c0_3] : memref<256x64xf32, #tpu.memory_space<vmem>>, vector<256x64xf32>
    %cst = arith.constant dense<0.000000e+00> : vector<4x64xf32>
    %3 = tpu.matmul %1, %2, %cst {dimension_numbers = #tpu.dot_dimension_numbers<[1], [0], [0], [1], [0, 0, 1, 1], [], []>} : vector<4x256xf32>, vector<256x64xf32>, vector<4x64xf32> -> vector<4x64xf32>
    %cst_4 = arith.constant 0.000000e+00 : f32
    %4 = vector.broadcast %cst_4 : f32 to vector<4x64xf32>
    %5 = tpu.concatenate %3, %4 in 0 : vector<4x64xf32>, vector<4x64xf32> -> vector<8x64xf32>
    %c0_5 = arith.constant 0 : index
    %c0_6 = arith.constant 0 : index
    %c0_7 = arith.constant 0 : index
    %6 = vector.load %arg3[%c0_5, %c0_6, %c0_7] : memref<1x8x64xf32, #tpu.memory_space<vmem>>, vector<1x8x64xf32>
    %7 = vector.shape_cast %6 : vector<1x8x64xf32> to vector<8x64xf32>
    %8 = vector.shape_cast %5 : vector<8x64xf32> to vector<1x8x64xf32>
    tpu.vector_store %arg3[%c0_5, %c0_6, %c0_7], %8 {strides = array<i32>} : memref<1x8x64xf32, #tpu.memory_space<vmem>>, vector<1x8x64xf32>,
    return
  }
  func.func @transform_0(%arg0: i32) -> (i32, i32, i32) {
    %c0_i32 = arith.constant 0 : i32
    %c0_i32_0 = arith.constant 0 : i32
    %c0_i32_1 = arith.constant 0 : i32
    return %arg0, %c0_i32, %c0_i32_0 : i32, i32, i32
  }
  func.func @transform_1(%arg0: i32) -> (i32, i32) {
    %c0_i32 = arith.constant 0 : i32
    %c0_i32_0 = arith.constant 0 : i32
    %c0_i32_1 = arith.constant 0 : i32
    return %c0_i32, %c0_i32_0 : i32, i32
  }
  func.func @transform_2(%arg0: i32) -> (i32, i32, i32) {
    %c0_i32 = arith.constant 0 : i32
    %c0_i32_0 = arith.constant 0 : i32
    %c0_i32_1 = arith.constant 0 : i32
    return %arg0, %c0_i32, %c0_i32_0 : i32, i32, i32
  }
}

</mosaic_0001>

<llo_original>
// kernel: downsample_b_forward.1
$region0: #{downsample_b_forward.1}
  #allocation0 [shape = 'u32[]', space=smem, size = 0x4, offset = 0x4, fixed_abs, tag = 'smem constant byte address 0x4 - core index']
  #allocation1 [shape = 'u32[144,128]{1,0:T(1,128)}', space=vmem, size = 0x12000, scoped, tag = 'internal scratch']
  %s0 = inlined_call_operand.vmem [shape: f32[2,4,256], index: 0, kind: input, shape index: {}]
  %s1 = inlined_call_operand.hbm [shape: f32[256,64], index: 1, kind: input, shape index: {}]
  %s2 = inlined_call_operand.vmem [shape: f32[2,8,64], index: 2, kind: output, shape index: {}]
  %s3 = sld [smem:[#allocation0]]
  $region45: #{downsample_b_forward.1} parent=0
    _
  %s5 = ssub.s32 1, %s3
  %s6 = scalar_select 0, %s5, %s3
  $region1: #{downsample_b_forward.1} parent=0
    #allocation2 [shape = 'u8[131072]{0}', space=vmem, size = 0x20000, scoped, tag = 'input window, operand 1, single buffered']
    #allocation3 [shape = 's32[2]{0}', space=sflag, size = 0x8, scoped, tag = 'scoped memory for downsample_b_forward.1']
    %7 = vsyncpa [#allocation3], 0
    loop: start=0, step=1, limit=4
    $region2: #{downsample_b_forward.1} parent=1 // loop_pre_header
      _
    $region3: #{downsample_b_forward.1} parent=1 // loop_header
      %s9 = sphi 0, %s13
      %p10 = scmp.ge.s32.totalorder %s9, 4
      %s19 = sphi 0, %s21
      %s22 = sphi 0, %s19
      %s23 = sphi 0, %s22
      %s39 = sphi 0, %s23
      %s43 = sphi 0, %s43
      %s45 = sphi 0, %s43
      %s46 = sphi 0, %s45
      %s60 = sphi 0, %s46
      %s66 = sphi 0, %s68
      %s69 = sphi 0, %s66
      %s70 = sphi 0, %s69
      %s86 = sphi 0, %s70
    $region4: #{downsample_b_forward.1} parent=1 // loop_header_branch
      %12 = sbr.rel (%p10) target = $region8
    $region5: #{downsample_b_forward.1} parent=1 // loop_body
      %s14 = ssub.s32 %s9, 1
      %s15 = ssub.s32 %s9, 2
      %s16 = sadd.s32 %s9, 1
      %s17 = ssub.s32 %s9, %s16
      %p18 = scmp.eq.s32.totalorder %s17, 0
      %s20 = sadd.s32 %s19, 1
      %s21 = scalar_select %p18, %s19, %s20
      %p24 = pneg %p18
      %p25 = scmp.eq.s32.totalorder %s9, 1
      %p26 = por %p24, %p25
      %p27 = scmp.ne.s32.totalorder %s19, %s22
      %p28 = scmp.eq.s32.totalorder %s9, 0
      %p29 = por %p27, %p28
      %p30 = scmp.ne.s32.totalorder %s19, %s22
      %p31 = scmp.eq.s32.totalorder %s14, 1
      %p32 = por %p30, %p31
      %p33 = scmp.ne.s32.totalorder %s22, %s23
      %p34 = scmp.eq.s32.totalorder %s14, 0
      %p35 = por %p33, %p34
      %p36 = scmp.ne.s32.totalorder %s22, %s23
      %p37 = scmp.eq.s32.totalorder %s15, 1
      %p38 = por %p36, %p37
      %p40 = scmp.ne.s32.totalorder %s23, %s39
      %p41 = scmp.eq.s32.totalorder %s15, 0
      %p42 = por %p40, %p41
      %s44 = sadd.s32 %s43, 1
      %p47 = scmp.eq.s32.totalorder %s9, 1
      %p48 = scmp.ne.s32.totalorder %s43, %s45
      %p49 = scmp.eq.s32.totalorder %s9, 0
      %p50 = por %p48, %p49
      %p51 = scmp.ne.s32.totalorder %s43, %s45
      %p52 = scmp.eq.s32.totalorder %s14, 1
      %p53 = por %p51, %p52
      %p54 = scmp.ne.s32.totalorder %s45, %s46
      %p55 = scmp.eq.s32.totalorder %s14, 0
      %p56 = por %p54, %p55
      %p57 = scmp.ne.s32.totalorder %s45, %s46
      %p58 = scmp.eq.s32.totalorder %s15, 1
      %p59 = por %p57, %p58
      %p61 = scmp.ne.s32.totalorder %s46, %s60
      %p62 = scmp.eq.s32.totalorder %s15, 0
      %p63 = por %p61, %p62
      %s64 = ssub.s32 %s9, %s16
      %p65 = scmp.eq.s32.totalorder %s64, 0
      %s67 = sadd.s32 %s66, 1
      %s68 = scalar_select %p65, %s66, %s67
      %p71 = pneg %p65
      %p72 = scmp.eq.s32.totalorder %s9, 1
      %p73 = por %p71, %p72
      %p74 = scmp.ne.s32.totalorder %s66, %s69
      %p75 = scmp.eq.s32.totalorder %s9, 0
      %p76 = por %p74, %p75
      %p77 = scmp.ne.s32.totalorder %s66, %s69
      %p78 = scmp.eq.s32.totalorder %s14, 1
      %p79 = por %p77, %p78
      %p80 = scmp.ne.s32.totalorder %s69, %s70
      %p81 = scmp.eq.s32.totalorder %s14, 0
      %p82 = por %p80, %p81
      %p83 = scmp.ne.s32.totalorder %s69, %s70
      %p84 = scmp.eq.s32.totalorder %s15, 1
      %p85 = por %p83, %p84
      %p87 = scmp.ne.s32.totalorder %s70, %s86
      %p88 = scmp.eq.s32.totalorder %s15, 0
      %p89 = por %p87, %p88
      %p90 = scmp.le.s32.totalorder 1, %s9
      %p91 = scmp.lt.s32.totalorder %s9, 3
      %p92 = pnand %p90, %p91
      %p93 = pneg %p92
      // Predicated region
      $region9: #{downsample_b_forward.1} parent=5 // pred_check
        _
      $region10: #{downsample_b_forward.1} parent=5 // pred_check_branch
        %95 = sbr.rel (%p92) target = $region12
      $region11: #{downsample_b_forward.1} parent=5 // pred_region
        %s96 = ssub.s32 %s9, 1
        // Predicated region
        $region13: #{downsample_b_forward.1} parent=11 // pred_check
          %p97 = pneg %p56
        $region14: #{downsample_b_forward.1} parent=11 // pred_check_branch
          %99 = sbr.rel (%p97) target = $region16
        $region15: #{downsample_b_forward.1} parent=11 // pred_region
          %s101 = ssub.s32 4096, 4096
          %102 = vsyncadd [#allocation3], %s101
          %s103 = sshll.u32 [#allocation2], 4
          %s104 = int_to_ptr.vmem [resolvable:$true] %s103
          %109 = dma.hbm_to_vmem [thread:$0]  %s1, 4096, %s104, [#allocation3], 128, 128, 8
        $region16: #{downsample_b_forward.1} parent=11 // pred_fallthru
          _
      $region12: #{downsample_b_forward.1} parent=5 // pred_fallthru
        _
      %p110 = scmp.lt.s32.totalorder %s9, 2
      // Predicated region
      $region17: #{downsample_b_forward.1} parent=5 // pred_check
        %p111 = pneg %p110
      $region18: #{downsample_b_forward.1} parent=5 // pred_check_branch
        %113 = sbr.rel (%p111) target = $region20
      $region19: #{downsample_b_forward.1} parent=5 // pred_region
        // Predicated region
        $region21: #{downsample_b_forward.1} parent=19 // pred_check
          %p114 = pneg %p29
        $region22: #{downsample_b_forward.1} parent=19 // pred_check_branch
          %116 = sbr.rel (%p114) target = $region24
        $region23: #{downsample_b_forward.1} parent=19 // pred_region
          %p117 = scmp.lt.s32.totalorder %s9, 1
          %s118 = scalar_select %p117, %s9, 1
          %s119 = smul.addr %s118, 2
          %s120 = smul.addr %s119, 4
          %s121 = scalar_lea.vmem %s0, %s120
        $region24: #{downsample_b_forward.1} parent=19 // pred_fallthru
          _
      $region20: #{downsample_b_forward.1} parent=5 // pred_fallthru
        _
      %p122 = scmp.le.s32.totalorder 1, %s9
      %p123 = scmp.lt.s32.totalorder %s9, 3
      %p124 = pnand %p122, %p123
      %p125 = pneg %p124
      // Predicated region
      $region25: #{downsample_b_forward.1} parent=5 // pred_check
        _
      $region26: #{downsample_b_forward.1} parent=5 // pred_check_branch
        %127 = sbr.rel (%p124) target = $region28
      $region27: #{downsample_b_forward.1} parent=5 // pred_region
        %s128 = ssub.s32 %s9, 1
        // Predicated region
        $region29: #{downsample_b_forward.1} parent=27 // pred_check
          %p129 = pneg %p56
        $region30: #{downsample_b_forward.1} parent=27 // pred_check_branch
          %131 = sbr.rel (%p129) target = $region32
        $region31: #{downsample_b_forward.1} parent=27 // pred_region
          %132 = dma.done [#allocation3], 4096
        $region32: #{downsample_b_forward.1} parent=27 // pred_fallthru
          _
        %p133 = scmp.lt.s32.totalorder %s14, 1
        %s134 = scalar_select %p133, %s14, 1
        %s135 = smul.addr %s134, 2
        %s136 = smul.addr %s135, 4
        %s137 = scalar_lea.vmem %s0, %s136
        %p138 = pneg %p35
        %p139 = pneg %p32
        %p140 = pneg %p56
        %p141 = pneg %p53
        %p142 = pneg %p82
        %p143 = pneg %p79
        %p144 = scmp.lt.s32.totalorder %s14, 1
        %s145 = scalar_select %p144, %s14, 1
        %s146 = smul.addr %s145, 8
        %s147 = scalar_lea.vmem %s2, %s146
        %p148 = scmp.lt.s32.totalorder %s14, 1
        %s149 = scalar_select %p148, %s14, 1
        %s150 = smul.addr %s149, 2
        %s151 = smul.addr %s150, 4
        %s152 = scalar_lea.vmem %s0, %s151
        %p153 = scmp.lt.s32.totalorder %s14, 1
        %s154 = scalar_select %p153, %s14, 1
        %s155 = smul.addr %s154, 8
        %s156 = scalar_lea.vmem %s2, %s155
        %v157 = vld [vmem:[%s152] sm:$0xff]
        %v158 = vld [vmem:[#allocation2] sm:$0xff]
        %v159 = vld [vmem:[#allocation2 + $0x8] sm:$0xff]
        %v160 = vld [vmem:[#allocation2 + $0x10] sm:$0xff]
        %v161 = vld [vmem:[#allocation2 + $0x18] sm:$0xff]
        %v162 = vld [vmem:[#allocation2 + $0x20] sm:$0xff]
        %v163 = vld [vmem:[#allocation2 + $0x28] sm:$0xff]
        %v164 = vld [vmem:[#allocation2 + $0x30] sm:$0xff]
        %v165 = vld [vmem:[#allocation2 + $0x38] sm:$0xff]
        %v166 = vld [vmem:[#allocation2 + $0x40] sm:$0xff]
        %v167 = vld [vmem:[#allocation2 + $0x48] sm:$0xff]
        %v168 = vld [vmem:[#allocation2 + $0x50] sm:$0xff]
        %v169 = vld [vmem:[#allocation2 + $0x58] sm:$0xff]
        %v170 = vld [vmem:[#allocation2 + $0x60] sm:$0xff]
        %v171 = vld [vmem:[#allocation2 + $0x68] sm:$0xff]
        %v172 = vld [vmem:[#allocation2 + $0x70] sm:$0xff]
        %v173 = vld [vmem:[#allocation2 + $0x78] sm:$0xff]
        %v174 = vld [vmem:[#allocation2 + $0x80] sm:$0xff]
        %v175 = vld [vmem:[#allocation2 + $0x88] sm:$0xff]
        %v176 = vld [vmem:[#allocation2 + $0x90] sm:$0xff]
        %v177 = vld [vmem:[#allocation2 + $0x98] sm:$0xff]
        %v178 = vld [vmem:[#allocation2 + $0xa0] sm:$0xff]
        %v179 = vld [vmem:[#allocation2 + $0xa8] sm:$0xff]
        %v180 = vld [vmem:[#allocation2 + $0xb0] sm:$0xff]
        %v181 = vld [vmem:[#allocation2 + $0xb8] sm:$0xff]
        %v182 = vld [vmem:[#allocation2 + $0xc0] sm:$0xff]
        %v183 = vld [vmem:[#allocation2 + $0xc8] sm:$0xff]
        %v184 = vld [vmem:[#allocation2 + $0xd0] sm:$0xff]
        %v185 = vld [vmem:[#allocation2 + $0xd8] sm:$0xff]
        %v186 = vld [vmem:[#allocation2 + $0xe0] sm:$0xff]
        %v187 = vld [vmem:[#allocation2 + $0xe8] sm:$0xff]
        %v188 = vld [vmem:[#allocation2 + $0xf0] sm:$0xff]
        %v189 = vld [vmem:[#allocation2 + $0xf8] sm:$0xff]
        %v191 = vcombine.high %v157, %v157
        %193 = vmatprep.subr.mxu0 0.0
        %194 = vmatpush1.msra.mxu0 %v158
        %195 = vmatprep.subr.mxu0 0.0
        %196 = vmatpush1.msra.mxu0 %v159
        %197 = vmatprep.subr.mxu0 0.0
        %198 = vmatpush1.msra.mxu0 %v160
        %199 = vmatprep.subr.mxu0 0.0
        %200 = vmatpush1.msra.mxu0 %v161
        %201 = vmatprep.subr.mxu0 0.0
        %202 = vmatpush1.msra.mxu0 %v162
        %203 = vmatprep.subr.mxu0 0.0
        %204 = vmatpush1.msra.mxu0 %v163
        %205 = vmatprep.subr.mxu0 0.0
        %206 = vmatpush1.msra.mxu0 %v164
        %207 = vmatprep.subr.mxu0 0.0
        %208 = vmatpush1.msra.mxu0 %v165
        %209 = vmatprep.subr.mxu0 0.0
        %210 = vmatpush1.msra.mxu0 %v166
        %211 = vmatprep.subr.mxu0 0.0
        %212 = vmatpush1.msra.mxu0 %v167
        %213 = vmatprep.subr.mxu0 0.0
        %214 = vmatpush1.msra.mxu0 %v168
        %215 = vmatprep.subr.mxu0 0.0
        %216 = vmatpush1.msra.mxu0 %v169
        %217 = vmatprep.subr.mxu0 0.0
        %218 = vmatpush1.msra.mxu0 %v170
        %219 = vmatprep.subr.mxu0 0.0
        %220 = vmatpush1.msra.mxu0 %v171
        %221 = vmatprep.subr.mxu0 0.0
        %222 = vmatpush1.msra.mxu0 %v172
        %223 = vmatprep.subr.mxu0 0.0
        %224 = vmatpush1.msra.mxu0 %v173
        %225 = vmatprep.subr.mxu0 0.0
        %226 = vmatpush1.msra.mxu0 %v174
        %227 = vmatprep.subr.mxu0 0.0
        %228 = vmatpush1.msra.mxu0 %v175
        %229 = vmatprep.subr.mxu0 0.0
        %230 = vmatpush1.msra.mxu0 %v176
        %231 = vmatprep.subr.mxu0 0.0
        %232 = vmatpush1.msra.mxu0 %v177
        %233 = vmatprep.subr.mxu0 0.0
        %234 = vmatpush1.msra.mxu0 %v178
        %235 = vmatprep.subr.mxu0 0.0
        %236 = vmatpush1.msra.mxu0 %v179
        %237 = vmatprep.subr.mxu0 0.0
        %238 = vmatpush1.msra.mxu0 %v180
        %239 = vmatprep.subr.mxu0 0.0
        %240 = vmatpush1.msra.mxu0 %v181
        %241 = vmatprep.subr.mxu0 0.0
        %242 = vmatpush1.msra.mxu0 %v182
        %243 = vmatprep.subr.mxu0 0.0
        %244 = vmatpush1.msra.mxu0 %v183
        %245 = vmatprep.subr.mxu0 0.0
        %246 = vmatpush1.msra.mxu0 %v184
        %247 = vmatprep.subr.mxu0 0.0
        %248 = vmatpush1.msra.mxu0 %v185
        %249 = vmatprep.subr.mxu0 0.0
        %250 = vmatpush1.msra.mxu0 %v186
        %251 = vmatprep.subr.mxu0 0.0
        %252 = vmatpush1.msra.mxu0 %v187
        %253 = vmatprep.subr.mxu0 0.0
        %254 = vmatpush1.msra.mxu0 %v188
        %255 = vmatprep.subr.mxu0 0.0
        %256 = vmatpush1.msra.mxu0 %v189
        %257 = vmatprep.mubr.f32.mxu0 %v191
        %258 = vmatmul.mubr.f32.gmra.mrb[0].mxu0 %v157
        %v259 = vpop.f32.mrb[0].mxu0
        %v260 = vadd.f32 0.0, %v259
        %v261 = vpop.f32.mrb[0].mxu0
        %262 = vdwg.mxu0
        %vm263 = vcmask 1043456
        %v264 = vsel %vm263, %v260, 0.0
        %vm265 = vcmask 523264
        %266 = vst.msk [vmem:[%s156] sm:$0xff] %vm265, %v264
        %p267 = scmp.lt.s32.totalorder %s14, 1
        %s268 = scalar_select %p267, %s14, 1
        %s269 = smul.addr %s268, 8
        %s270 = scalar_lea.vmem %s2, %s269
        // Predicated region
        $region33: #{downsample_b_forward.1} parent=27 // pred_check
          %p271 = pneg %p79
        $region34: #{downsample_b_forward.1} parent=27 // pred_check_branch
          %273 = sbr.rel (%p271) target = $region36
        $region35: #{downsample_b_forward.1} parent=27 // pred_region
          _
        $region36: #{downsample_b_forward.1} parent=27 // pred_fallthru
          _
      $region28: #{downsample_b_forward.1} parent=5 // pred_fallthru
        _
      %p274 = scmp.le.s32.totalorder 2, %s9
      // Predicated region
      $region37: #{downsample_b_forward.1} parent=5 // pred_check
        %p275 = pneg %p274
      $region38: #{downsample_b_forward.1} parent=5 // pred_check_branch
        %277 = sbr.rel (%p275) target = $region40
      $region39: #{downsample_b_forward.1} parent=5 // pred_region
        %s278 = ssub.s32 %s9, 2
        // Predicated region
        $region41: #{downsample_b_forward.1} parent=39 // pred_check
          %p279 = pneg %p85
        $region42: #{downsample_b_forward.1} parent=39 // pred_check_branch
          %281 = sbr.rel (%p279) target = $region44
        $region43: #{downsample_b_forward.1} parent=39 // pred_region
          %p282 = scmp.lt.s32.totalorder %s15, 1
          %s283 = scalar_select %p282, %s15, 1
          %s284 = smul.addr %s283, 8
          %s285 = scalar_lea.vmem %s2, %s284
        $region44: #{downsample_b_forward.1} parent=39 // pred_fallthru
          _
      $region40: #{downsample_b_forward.1} parent=5 // pred_fallthru
        _
    $region6: #{downsample_b_forward.1} parent=1 // loop_footer
      %s13 = sadd.s32 1, %s9
    $region7: #{downsample_b_forward.1} parent=1 // loop_footer_branch
      %8 = sbr.rel target = $region3
    $region8: #{downsample_b_forward.1} parent=1 // loop_exit
      _
    %286 = vsyncpa [#allocation3], 1
    %s287 = scalar_lea.sflag [#allocation3], 1
    %288 = vsyncpa %s287, 1

</llo_original>
